<compile_context>
chip_gen: v5e
topology: v5e:2x2
jax: 0.10.0
libtpu: 0.0.40
codegen_flags: <defaults>
</compile_context>

<pallas_src>
import functools

import jax
import jax.numpy as jnp
from jax.experimental import pallas as pl
from jax.experimental.pallas import tpu as pltpu

LANE = 128   # lane width / fc0 output width
H0 = 128     # fc0 out features
H1 = 64      # fc1 out features


def _round_up(n, m):
    return (n + m - 1) // m * m


def _critic_kernel(x_ref, p_ref, o_ref, *, in_pad):
    """One batch tile of the fused 3-layer MLP.

    x_ref: (TB, in_pad) bf16
    p_ref: (in_pad + 280, 128) bf16  packed parameter slab
    o_ref: (TB, 128) f32             column 0 holds Q, columns 1..127 are 0
    """
    # Static sublane offsets into the packed slab (all multiples of 8).
    o_w0 = 0
    o_b0 = o_w0 + in_pad
    o_w1 = o_b0 + 8
    o_b1 = o_w1 + LANE
    o_w2 = o_b1 + 8
    o_b2 = o_w2 + LANE

    f32, bf16 = jnp.float32, jnp.bfloat16

    x = x_ref[...]                                        # (TB, in_pad) bf16

    # fc0 + relu
    w0 = p_ref[pl.ds(o_w0, in_pad), :]                    # (in_pad, 128) bf16
    b0 = p_ref[pl.ds(o_b0, 1), :].astype(f32)             # (1, 128)
    h = jnp.dot(x, w0, preferred_element_type=f32) + b0
    h = jnp.maximum(h, 0.0).astype(bf16)                  # (TB, 128)

    # fc1 + relu (w1 lane-padded 64 -> 128 with zeros)
    w1 = p_ref[pl.ds(o_w1, LANE), :]                      # (128, 128) bf16
    b1 = p_ref[pl.ds(o_b1, 1), :].astype(f32)
    h = jnp.dot(h, w1, preferred_element_type=f32) + b1
    h = jnp.maximum(h, 0.0).astype(bf16)                  # (TB, 128), cols >=64 are 0

    # fc2 (w2 padded to (128,128); only [0:64, 0] is non-zero)
    w2 = p_ref[pl.ds(o_w2, LANE), :]
    b2 = p_ref[pl.ds(o_b2, 1), :].astype(f32)
    q = jnp.dot(h, w2, preferred_element_type=f32) + b2   # (TB, 128)

    o_ref[...] = q.astype(o_ref.dtype)


def pack_critic_params(params, in_pad):
    """Pack w0,b0,w1,b1,w2,b2 into one (in_pad+280, 128) bf16 slab."""
    w0, b0, w1, b1, w2, b2 = params

    def seg(a, rows, cols=LANE):
        return jnp.pad(a, ((0, rows - a.shape[0]), (0, cols - a.shape[1])))

    slab = jnp.concatenate(
        [
            seg(w0, in_pad),   # (in_pad, 128)
            seg(b0, 8),        # (8, 128), row 0 = b0
            seg(w1, LANE),     # (128, 128), cols >=64 zero
            seg(b1, 8),
            seg(w2, LANE),     # (128, 128), only [0:64, 0] non-zero
            seg(b2, 8),
        ],
        axis=0,
    )
    return slab.astype(jnp.bfloat16)


def critic_forward(x, params, *, batch_tile=512):
    """x: (B, obs_dim + action_dim) float32 -> (B, 1) float32 Q-values."""
    B, in_dim = x.shape
    in_pad = _round_up(in_dim, 8)

    tb = min(batch_tile, _round_up(B, 8))
    b_pad = _round_up(B, tb)
    n_tiles = b_pad // tb

    # Pad batch/feature dims; feed the MXU bf16 (f32 accumulation in-kernel).
    x_p = jnp.pad(x, ((0, b_pad - B), (0, in_pad - in_dim))).astype(jnp.bfloat16)
    slab = pack_critic_params(params, in_pad)
    slab_rows = slab.shape[0]

    kernel = functools.partial(_critic_kernel, in_pad=in_pad)

    flops = 2 * b_pad * (in_pad * H0 + H0 * LANE + LANE * LANE)
    bytes_accessed = x_p.size * 2 + slab.size * 2 + b_pad * LANE * 4

    out = pl.pallas_call(
        kernel,
        out_shape=jax.ShapeDtypeStruct((b_pad, LANE), jnp.float32),
        grid_spec=pltpu.PrefetchScalarGridSpec(
            num_scalar_prefetch=0,
            grid=(n_tiles,),
            in_specs=[
                pl.BlockSpec((tb, in_pad), lambda i: (i, 0)),          # x tile
                pl.BlockSpec((slab_rows, LANE), lambda i: (0, 0)),     # resident params
            ],
            out_specs=pl.BlockSpec((tb, LANE), lambda i: (i, 0)),
        ),
        compiler_params=pltpu.CompilerParams(
            dimension_semantics=("parallel",),
        ),
        cost_estimate=pl.CostEstimate(
            flops=flops, transcendentals=0, bytes_accessed=bytes_accessed
        ),
    )(x_p, slab)

    return out[:B, :1]


def init_critic_params(key, obs_dim, action_dim):
    """PyTorch-Linear-like uniform init; weights stored (in, out), biases (1, out)."""
    in_dim = obs_dim + action_dim
    ks = jax.random.split(key, 6)

    def uniform(k, shape, fan_in):
        bound = 1.0 / jnp.sqrt(jnp.float32(fan_in))
        return jax.random.uniform(k, shape, jnp.float32, -bound, bound)

    w0 = uniform(ks[0], (in_dim, H0), in_dim)
    b0 = uniform(ks[1], (1, H0), in_dim)
    w1 = uniform(ks[2], (H0, H1), H0)
    b1 = uniform(ks[3], (1, H1), H0)
    w2 = uniform(ks[4], (H1, 1), H1)
    b2 = uniform(ks[5], (1, 1), H1)
    return (w0, b0, w1, b1, w2, b2)


def critic_reference(x, params):
    """Pure-JAX reference emulating the kernel's bf16-in / f32-accumulate math."""
    w0, b0, w1, b1, w2, b2 = params
    bf, f32 = jnp.bfloat16, jnp.float32
    h = jnp.dot(x.astype(bf), w0.astype(bf), preferred_element_type=f32)
    h = jnp.maximum(h + b0.astype(bf).astype(f32), 0.0).astype(bf)
    h = jnp.dot(h, w1.astype(bf), preferred_element_type=f32)
    h = jnp.maximum(h + b1.astype(bf).astype(f32), 0.0).astype(bf)
    q = jnp.dot(h, w2.astype(bf), preferred_element_type=f32)
    return q + b2.astype(bf).astype(f32)


if __name__ == "__main__":
    key = jax.random.PRNGKey(0)
    k_params, k_obs, k_act = jax.random.split(key, 3)

    batch, obs_dim, action_dim = 8, 32, 8
    params = init_critic_params(k_params, obs_dim, action_dim)
    obs = jax.random.normal(k_obs, (batch, obs_dim), jnp.float32)
    act = jax.random.normal(k_act, (batch, action_dim), jnp.float32)
    x = jnp.concatenate([obs, act], axis=-1)   # Critic input: concat(obs, action)

    q = critic_forward(x, params)
    q = jax.block_until_ready(q)

    ref = critic_reference(x, params)
    assert q.shape == (batch, 1)
    assert jnp.allclose(q, ref, atol=2e-2, rtol=2e-2), "mismatch vs JAX reference"

    print("KERNEL_OK")
</pallas_src>

<mosaic_0001>
module attributes {stable_mosaic.version = 11 : i64} {
  func.func @_critic_kernel(%arg0: i32, %arg1: memref<8x40xbf16, #tpu.memory_space<vmem>>, %arg2: memref<320x128xbf16, #tpu.memory_space<vmem>>, %arg3: memref<8x128xf32, #tpu.memory_space<vmem>>) attributes {dimension_semantics = [#tpu.dimension_semantics<parallel>], iteration_bounds = array<i64: 1>, scalar_prefetch = 0 : i64, scratch_operands = 0 : i64, tpu.core_type = #tpu.core_type<tc>, window_params = [{transform_indices = @transform_0, window_bounds = array<i64: 8, 40>}, {pipeline_mode = #tpu.pipeline_mode<synchronous>, transform_indices = @transform_1, window_bounds = array<i64: 320, 128>}, {transform_indices = @transform_2, window_bounds = array<i64: 8, 128>}]} {
    %c0 = arith.constant 0 : index
    %c0_0 = arith.constant 0 : index
    %0 = vector.load %arg1[%c0, %c0_0] : memref<8x40xbf16, #tpu.memory_space<vmem>>, vector<8x40xbf16>
    %c0_1 = arith.constant 0 : index
    %c0_2 = arith.constant 0 : index
    %1 = vector.load %arg2[%c0_1, %c0_2] : memref<320x128xbf16, #tpu.memory_space<vmem>>, vector<40x128xbf16>
    %c40 = arith.constant 40 : index
    %c0_3 = arith.constant 0 : index
    %2 = vector.load %arg2[%c40, %c0_3] : memref<320x128xbf16, #tpu.memory_space<vmem>>, vector<1x128xbf16>
    %3 = arith.extf %2 : vector<1x128xbf16> to vector<1x128xf32>
    %cst = arith.constant dense<0.000000e+00> : vector<8x128xf32>
    %4 = tpu.matmul %0, %1, %cst {dimension_numbers = #tpu.dot_dimension_numbers<[1], [0], [0], [1], [0, 0, 1, 1], [], []>} : vector<8x40xbf16>, vector<40x128xbf16>, vector<8x128xf32> -> vector<8x128xf32>
    %5 = vector.broadcast %3 : vector<1x128xf32> to vector<8x128xf32>
    %6 = arith.addf %4, %5 : vector<8x128xf32>
    %cst_4 = arith.constant 0.000000e+00 : f32
    %7 = vector.broadcast %cst_4 : f32 to vector<8x128xf32>
    %8 = arith.maximumf %6, %7 : vector<8x128xf32>
    %9 = arith.truncf %8 : vector<8x128xf32> to vector<8x128xbf16>
    %c48 = arith.constant 48 : index
    %c0_5 = arith.constant 0 : index
    %10 = vector.load %arg2[%c48, %c0_5] : memref<320x128xbf16, #tpu.memory_space<vmem>>, vector<128x128xbf16>
    %c176 = arith.constant 176 : index
    %c0_6 = arith.constant 0 : index
    %11 = vector.load %arg2[%c176, %c0_6] : memref<320x128xbf16, #tpu.memory_space<vmem>>, vector<1x128xbf16>
    %12 = arith.extf %11 : vector<1x128xbf16> to vector<1x128xf32>
    %cst_7 = arith.constant dense<0.000000e+00> : vector<8x128xf32>
    %13 = tpu.matmul %9, %10, %cst_7 {dimension_numbers = #tpu.dot_dimension_numbers<[1], [0], [0], [1], [0, 0, 1, 1], [], []>} : vector<8x128xbf16>, vector<128x128xbf16>, vector<8x128xf32> -> vector<8x128xf32>
    %14 = vector.broadcast %12 : vector<1x128xf32> to vector<8x128xf32>
    %15 = arith.addf %13, %14 : vector<8x128xf32>
    %cst_8 = arith.constant 0.000000e+00 : f32
    %16 = vector.broadcast %cst_8 : f32 to vector<8x128xf32>
    %17 = arith.maximumf %15, %16 : vector<8x128xf32>
    %18 = arith.truncf %17 : vector<8x128xf32> to vector<8x128xbf16>
    %c184 = arith.constant 184 : index
    %c0_9 = arith.constant 0 : index
    %19 = vector.load %arg2[%c184, %c0_9] : memref<320x128xbf16, #tpu.memory_space<vmem>>, vector<128x128xbf16>
    %c312 = arith.constant 312 : index
    %c0_10 = arith.constant 0 : index
    %20 = vector.load %arg2[%c312, %c0_10] : memref<320x128xbf16, #tpu.memory_space<vmem>>, vector<1x128xbf16>
    %21 = arith.extf %20 : vector<1x128xbf16> to vector<1x128xf32>
    %cst_11 = arith.constant dense<0.000000e+00> : vector<8x128xf32>
    %22 = tpu.matmul %18, %19, %cst_11 {dimension_numbers = #tpu.dot_dimension_numbers<[1], [0], [0], [1], [0, 0, 1, 1], [], []>} : vector<8x128xbf16>, vector<128x128xbf16>, vector<8x128xf32> -> vector<8x128xf32>
    %23 = vector.broadcast %21 : vector<1x128xf32> to vector<8x128xf32>
    %24 = arith.addf %22, %23 : vector<8x128xf32>
    %c0_12 = arith.constant 0 : index
    %c0_13 = arith.constant 0 : index
    %25 = vector.load %arg3[%c0_12, %c0_13] : memref<8x128xf32, #tpu.memory_space<vmem>>, vector<8x128xf32>
    tpu.vector_store %arg3[%c0_12, %c0_13], %24 {strides = array<i32>} : memref<8x128xf32, #tpu.memory_space<vmem>>, vector<8x128xf32>,
    return
  }
  func.func @transform_0(%arg0: i32) -> (i32, i32) {
    %c0_i32 = arith.constant 0 : i32
    %c0_i32_0 = arith.constant 0 : i32
    return %arg0, %c0_i32 : i32, i32
  }
  func.func @transform_1(%arg0: i32) -> (i32, i32) {
    %c0_i32 = arith.constant 0 : i32
    %c0_i32_0 = arith.constant 0 : i32
    %c0_i32_1 = arith.constant 0 : i32
    return %c0_i32, %c0_i32_0 : i32, i32
  }
  func.func @transform_2(%arg0: i32) -> (i32, i32) {
    %c0_i32 = arith.constant 0 : i32
    %c0_i32_0 = arith.constant 0 : i32
    return %arg0, %c0_i32 : i32, i32
  }
}

</mosaic_0001>

<llo_original>
// kernel: tpu_custom_call.1
$region0: #{tpu_custom_call.1}
  #allocation0 [shape = 'u32[]', space=smem, size = 0x4, offset = 0x4, fixed_abs, tag = 'smem constant byte address 0x4 - core index']
  #allocation1 [shape = 'u32[72,128]{1,0:T(1,128)}', space=vmem, size = 0x9000, scoped, tag = 'internal scratch']
  %s0 = inlined_call_operand.hbm [shape: bf16[8,40], index: 0, kind: input, shape index: {}]
  %s1 = inlined_call_operand.hbm [shape: bf16[320,128], index: 1, kind: input, shape index: {}]
  %s2 = inlined_call_operand.hbm [shape: f32[8,128], index: 2, kind: output, shape index: {}]
  %s3 = sld [smem:[#allocation0]]
  $region26: #{tpu_custom_call.1} parent=0
    _
  %s5 = ssub.s32 1, %s3
  %s6 = scalar_select 0, %s5, %s3
  $region1: #{tpu_custom_call.1} parent=0
    #allocation2 [shape = 'u8[2048]{0}', space=vmem, size = 0x800, scoped, tag = 'input window, operand 0, single buffered']
    #allocation3 [shape = 's32[1]{0}', space=sflag, size = 0x4, scoped, tag = 'scoped memory for tpu_custom_call.1']
    #allocation4 [shape = 's32[1]{0}', space=sflag, size = 0x4, scoped, tag = 'scoped memory for tpu_custom_call.1']
    #allocation5 [shape = 'u8[81920]{0}', space=vmem, size = 0x14000, scoped, tag = 'input window, operand 1, single buffered']
    #allocation6 [shape = 's32[1]{0}', space=sflag, size = 0x4, scoped, tag = 'scoped memory for tpu_custom_call.1']
    #allocation7 [shape = 'u8[4096]{0}', space=vmem, size = 0x1000, scoped, tag = 'output window, operand 0, single buffered']
    %7 = vsyncpa [#allocation3], 0
    %8 = vsyncpa [#allocation6], 0
    %9 = vsyncpa [#allocation4], 0
    // Predicated region
    $region2: #{tpu_custom_call.1} parent=1 // pred_check
      _
    $region3: #{tpu_custom_call.1} parent=1 // pred_check_branch
      %11 = sbr.rel (0) target = $region5
    $region4: #{tpu_custom_call.1} parent=1 // pred_region
      %13 = vsyncadd [#allocation3], 0
      %s15 = sshll.u32 %s0, 4
      %s16 = int_to_ptr.hbm [resolvable:$true] %s15
      %s17 = sshll.u32 [#allocation2], 4
      %s18 = int_to_ptr.vmem [resolvable:$true] %s17
      %20 = dma.hbm_to_vmem [thread:$0]  %s16, 64, %s18, [#allocation3]
    $region5: #{tpu_custom_call.1} parent=1 // pred_fallthru
      _
    // Predicated region
    $region6: #{tpu_custom_call.1} parent=1 // pred_check
      _
    $region7: #{tpu_custom_call.1} parent=1 // pred_check_branch
      %22 = sbr.rel (0) target = $region9
    $region8: #{tpu_custom_call.1} parent=1 // pred_region
      %24 = vsyncadd [#allocation6], 0
      %s25 = sshll.u32 %s1, 4
      %s26 = int_to_ptr.hbm [resolvable:$true] %s25
      %s27 = sshll.u32 [#allocation5], 4
      %s28 = int_to_ptr.vmem [resolvable:$true] %s27
      %33 = dma.hbm_to_vmem [thread:$0]  %s26, 2560, %s28, [#allocation6], 64, 64, 4
    $region9: #{tpu_custom_call.1} parent=1 // pred_fallthru
      _
    // Predicated region
    $region10: #{tpu_custom_call.1} parent=1 // pred_check
      _
    $region11: #{tpu_custom_call.1} parent=1 // pred_check_branch
      %35 = sbr.rel (0) target = $region13
    $region12: #{tpu_custom_call.1} parent=1 // pred_region
      %37 = dma.done [#allocation3], 64
    $region13: #{tpu_custom_call.1} parent=1 // pred_fallthru
      _
    // Predicated region
    $region14: #{tpu_custom_call.1} parent=1 // pred_check
      _
    $region15: #{tpu_custom_call.1} parent=1 // pred_check_branch
      %39 = sbr.rel (0) target = $region17
    $region16: #{tpu_custom_call.1} parent=1 // pred_region
      %41 = dma.done [#allocation6], 2560
    $region17: #{tpu_custom_call.1} parent=1 // pred_fallthru
      _
    %v43 = vld [vmem:[#allocation2] sm:$0xf]
    %v44 = vld [vmem:[#allocation5] sm:$0xf]
    %v45 = vld [vmem:[#allocation5 + $0x4] sm:$0xf]
    %v46 = vld [vmem:[#allocation5 + $0x8] sm:$0xf]
    %v47 = vld [vmem:[#allocation5 + $0xc] sm:$0xf]
    %v48 = vld [vmem:[#allocation5 + $0x10] sm:$0xf]
    %v49 = vld [vmem:[#allocation5 + $0x14] sm:$0x1]
    %v50 = vunpack.c.l.bf16 %v49
    %v51 = vperm.slane %v50, 0
    %v57 = vunpack.c.l.b16 %v44
    %v58 = vunpack.c.l.b16 %v45
    %v59 = vunpack.c.l.b16 %v46
    %v60 = vunpack.c.l.b16 %v47
    %v61 = vunpack.c.l.b16 %v48
    %v62 = vpack.c.b16 %v58, %v57
    %v63 = vpack.c.b16 %v60, %v59
    %v64 = vpack.c.b16 %v61, %v61
    %vm67 = vcmask 326656
    %v69 = vsel %vm67, %v43, 0
    %vm71 = vcmask 1043456
    %v73 = vsel %vm71, %v64, 0
    %75 = vmatpush.bf16.msra.mxu0 0
    %76 = vmatpush.bf16.msra.mxu0 0
    %77 = vmatpush.bf16.msra.mxu0 0
    %78 = vmatpush.bf16.msra.mxu0 0
    %79 = vmatpush.bf16.msra.mxu0 0
    %80 = vmatpush.bf16.msra.mxu0 %v73
    %81 = vmatpush.bf16.msra.mxu0 %v63
    %82 = vmatpush.bf16.msra.mxu0 %v62
    %83 = vmatmul.bf16.gmra.mxu0 %v69
    %v84 = vpop.f32.mrf.mxu0
    %v85 = vadd.f32 %v51, %v84
    %v86 = vpop.f32.mrf.mxu0
    %87 = vdwg.mxu0
    %v88 = vmax.f32 %v85, 0.0
    %v89 = vpack.c.bf16 %v88, %v88
    %v90 = vld [vmem:[#allocation5 + $0x18] sm:$0xf]
    %v91 = vld [vmem:[#allocation5 + $0x1c] sm:$0xf]
    %v92 = vld [vmem:[#allocation5 + $0x20] sm:$0xf]
    %v93 = vld [vmem:[#allocation5 + $0x24] sm:$0xf]
    %v94 = vld [vmem:[#allocation5 + $0x28] sm:$0xf]
    %v95 = vld [vmem:[#allocation5 + $0x2c] sm:$0xf]
    %v96 = vld [vmem:[#allocation5 + $0x30] sm:$0xf]
    %v97 = vld [vmem:[#allocation5 + $0x34] sm:$0xf]
    %v98 = vld [vmem:[#allocation5 + $0x38] sm:$0xf]
    %v99 = vld [vmem:[#allocation5 + $0x3c] sm:$0xf]
    %v100 = vld [vmem:[#allocation5 + $0x40] sm:$0xf]
    %v101 = vld [vmem:[#allocation5 + $0x44] sm:$0xf]
    %v102 = vld [vmem:[#allocation5 + $0x48] sm:$0xf]
    %v103 = vld [vmem:[#allocation5 + $0x4c] sm:$0xf]
    %v104 = vld [vmem:[#allocation5 + $0x50] sm:$0xf]
    %v105 = vld [vmem:[#allocation5 + $0x54] sm:$0xf]
    %v106 = vld [vmem:[#allocation5 + $0x58] sm:$0x1]
    %v107 = vunpack.c.l.bf16 %v106
    %v108 = vperm.slane %v107, 0
    %v125 = vunpack.c.l.b16 %v90
    %v126 = vunpack.c.l.b16 %v91
    %v127 = vunpack.c.l.b16 %v92
    %v128 = vunpack.c.l.b16 %v93
    %v129 = vunpack.c.l.b16 %v94
    %v130 = vunpack.c.l.b16 %v95
    %v131 = vunpack.c.l.b16 %v96
    %v132 = vunpack.c.l.b16 %v97
    %v133 = vunpack.c.l.b16 %v98
    %v134 = vunpack.c.l.b16 %v99
    %v135 = vunpack.c.l.b16 %v100
    %v136 = vunpack.c.l.b16 %v101
    %v137 = vunpack.c.l.b16 %v102
    %v138 = vunpack.c.l.b16 %v103
    %v139 = vunpack.c.l.b16 %v104
    %v140 = vunpack.c.l.b16 %v105
    %v141 = vpack.c.b16 %v126, %v125
    %v142 = vpack.c.b16 %v128, %v127
    %v143 = vpack.c.b16 %v130, %v129
    %v144 = vpack.c.b16 %v132, %v131
    %v145 = vpack.c.b16 %v134, %v133
    %v146 = vpack.c.b16 %v136, %v135
    %v147 = vpack.c.b16 %v138, %v137
    %v148 = vpack.c.b16 %v140, %v139
    %157 = vmatpush.bf16.msra.mxu0 %v148
    %158 = vmatpush.bf16.msra.mxu0 %v147
    %159 = vmatpush.bf16.msra.mxu0 %v146
    %160 = vmatpush.bf16.msra.mxu0 %v145
    %161 = vmatpush.bf16.msra.mxu0 %v144
    %162 = vmatpush.bf16.msra.mxu0 %v143
    %163 = vmatpush.bf16.msra.mxu0 %v142
    %164 = vmatpush.bf16.msra.mxu0 %v141
    %165 = vmatmul.bf16.gmra.mxu0 %v89
    %v166 = vpop.f32.mrf.mxu0
    %v167 = vadd.f32 %v108, %v166
    %v168 = vpop.f32.mrf.mxu0
    %169 = vdwg.mxu0
    %v170 = vmax.f32 %v167, 0.0
    %v171 = vpack.c.bf16 %v170, %v170
    %v172 = vld [vmem:[#allocation5 + $0x5c] sm:$0xf]
    %v173 = vld [vmem:[#allocation5 + $0x60] sm:$0xf]
    %v174 = vld [vmem:[#allocation5 + $0x64] sm:$0xf]
    %v175 = vld [vmem:[#allocation5 + $0x68] sm:$0xf]
    %v176 = vld [vmem:[#allocation5 + $0x6c] sm:$0xf]
    %v177 = vld [vmem:[#allocation5 + $0x70] sm:$0xf]
    %v178 = vld [vmem:[#allocation5 + $0x74] sm:$0xf]
    %v179 = vld [vmem:[#allocation5 + $0x78] sm:$0xf]
    %v180 = vld [vmem:[#allocation5 + $0x7c] sm:$0xf]
    %v181 = vld [vmem:[#allocation5 + $0x80] sm:$0xf]
    %v182 = vld [vmem:[#allocation5 + $0x84] sm:$0xf]
    %v183 = vld [vmem:[#allocation5 + $0x88] sm:$0xf]
    %v184 = vld [vmem:[#allocation5 + $0x8c] sm:$0xf]
    %v185 = vld [vmem:[#allocation5 + $0x90] sm:$0xf]
    %v186 = vld [vmem:[#allocation5 + $0x94] sm:$0xf]
    %v187 = vld [vmem:[#allocation5 + $0x98] sm:$0xf]
    %v188 = vld [vmem:[#allocation5 + $0x9c] sm:$0x1]
    %v189 = vunpack.c.l.bf16 %v188
    %v190 = vperm.slane %v189, 0
    %v207 = vunpack.c.l.b16 %v172
    %v208 = vunpack.c.l.b16 %v173
    %v209 = vunpack.c.l.b16 %v174
    %v210 = vunpack.c.l.b16 %v175
    %v211 = vunpack.c.l.b16 %v176
    %v212 = vunpack.c.l.b16 %v177
    %v213 = vunpack.c.l.b16 %v178
    %v214 = vunpack.c.l.b16 %v179
    %v215 = vunpack.c.l.b16 %v180
    %v216 = vunpack.c.l.b16 %v181
    %v217 = vunpack.c.l.b16 %v182
    %v218 = vunpack.c.l.b16 %v183
    %v219 = vunpack.c.l.b16 %v184
    %v220 = vunpack.c.l.b16 %v185
    %v221 = vunpack.c.l.b16 %v186
    %v222 = vunpack.c.l.b16 %v187
    %v223 = vpack.c.b16 %v208, %v207
    %v224 = vpack.c.b16 %v210, %v209
    %v225 = vpack.c.b16 %v212, %v211
    %v226 = vpack.c.b16 %v214, %v213
    %v227 = vpack.c.b16 %v216, %v215
    %v228 = vpack.c.b16 %v218, %v217
    %v229 = vpack.c.b16 %v220, %v219
    %v230 = vpack.c.b16 %v222, %v221
    %239 = vmatpush.bf16.msra.mxu0 %v230
    %240 = vmatpush.bf16.msra.mxu0 %v229
    %241 = vmatpush.bf16.msra.mxu0 %v228
    %242 = vmatpush.bf16.msra.mxu0 %v227
    %243 = vmatpush.bf16.msra.mxu0 %v226
    %244 = vmatpush.bf16.msra.mxu0 %v225
    %245 = vmatpush.bf16.msra.mxu0 %v224
    %246 = vmatpush.bf16.msra.mxu0 %v223
    %247 = vmatmul.bf16.gmra.mxu0 %v171
    %v248 = vpop.f32.mrf.mxu0
    %v249 = vadd.f32 %v190, %v248
    %v250 = vpop.f32.mrf.mxu0
    %251 = vdwg.mxu0
    %252 = vst [vmem:[#allocation7] sm:$0xff] %v249
    // Predicated region
    $region18: #{tpu_custom_call.1} parent=1 // pred_check
      _
    $region19: #{tpu_custom_call.1} parent=1 // pred_check_branch
      %254 = sbr.rel (0) target = $region21
    $region20: #{tpu_custom_call.1} parent=1 // pred_region
      %256 = vsyncadd [#allocation4], 0
      %s258 = sshll.u32 [#allocation7], 4
      %s259 = int_to_ptr.vmem [resolvable:$true] %s258
      %s260 = sshll.u32 %s2, 4
      %s261 = int_to_ptr.hbm [resolvable:$true] %s260
      %263 = dma.vmem_to_hbm [thread:$0]  %s259, 128, %s261, [#allocation4]
    $region21: #{tpu_custom_call.1} parent=1 // pred_fallthru
      _
    // Predicated region
    $region22: #{tpu_custom_call.1} parent=1 // pred_check
      _
    $region23: #{tpu_custom_call.1} parent=1 // pred_check_branch
      %265 = sbr.rel (0) target = $region25
    $region24: #{tpu_custom_call.1} parent=1 // pred_region
      %267 = dma.done [#allocation4], 128
    $region25: #{tpu_custom_call.1} parent=1 // pred_fallthru
      _
    %268 = vsyncpa [#allocation3], 1
    %269 = vsyncpa [#allocation6], 1
    %270 = vsyncpa [#allocation4], 1

</llo_original>
